<compile_context>
chip_gen: v6e
topology: v6e:2x2x1
jax: 0.10.0
libtpu: 0.0.40
codegen_flags: <defaults>
</compile_context>

<pallas_src>
import jax
import jax.numpy as jnp
from jax import lax
from jax.experimental import pallas as pl
from jax.experimental.pallas import tpu as pltpu

_LANE = 128
_MIB = 1024 * 1024

# Table-resident path is only taken when both tables comfortably fit in VMEM
# alongside the double-buffered pipeline + one-hot transients.
_RESIDENT_MAX_ROWS = 1024
_RESIDENT_MAX_TABLE_BYTES = 1 * _MIB
_RESIDENT_MAX_BT = 512

_STREAM_TARGET_BYTES = 2 * _MIB     # per input, per grid step
_STREAM_MAX_ROWS = 4096


def _round_up(x, m):
    return -(-x // m) * m


def _cap_for_megacore(bt, batch):
    """Ensure >= 2 grid steps (v7x: 2 TensorCores) when the batch allows it."""
    bt = min(bt, _round_up(batch, _LANE))
    if batch > _LANE:
        bt = min(bt, _round_up(pl.cdiv(batch, 2), _LANE))
    return max(_LANE, bt)


# --------------------------------------------------------------------------- #
# Kernels
# --------------------------------------------------------------------------- #

def _stream_kernel(eu_ref, ei_ref, out_ref):
    """Gathered-rows streaming path: multiply (VPU) + row reduce (XLU)."""
    eu = eu_ref[...].astype(jnp.float32)                 # (bt, F)
    ei = ei_ref[...].astype(jnp.float32)                 # (bt, F)
    s = jnp.sum(eu * ei, axis=-1)                        # (bt,) f32
    # Lane-dense store: per-row sums along the 128-lane axis -> unmasked vst.
    out_ref[...] = s[None, :].astype(out_ref.dtype)      # (1, bt)


def _resident_kernel(u_ref, i_ref, ut_ref, it_ref, out_ref):
    """Table-resident path: in-kernel gather via exact one-hot MXU matmul.

    u_ref/i_ref: (bt, 1) int32 index tiles.
    ut_ref/it_ref: full (V, F) embedding tables, DMA'd to VMEM once
                   (constant index_map -> no re-fetch across grid steps).
    """
    bt = u_ref.shape[0]
    vu = ut_ref.shape[0]
    vi = it_ref.shape[0]
    # one_hot @ table selects rows exactly (products are x*1 or x*0, sums of
    # exact zeros), so numerics match a true gather bit-for-bit in f32 acc.
    oh_u = (u_ref[...] == lax.broadcasted_iota(jnp.int32, (bt, vu), 1)
            ).astype(ut_ref.dtype)                       # (bt, Vu)
    oh_i = (i_ref[...] == lax.broadcasted_iota(jnp.int32, (bt, vi), 1)
            ).astype(it_ref.dtype)                       # (bt, Vi)
    eu = jnp.dot(oh_u, ut_ref[...], preferred_element_type=jnp.float32)  # (bt, F)
    ei = jnp.dot(oh_i, it_ref[...], preferred_element_type=jnp.float32)  # (bt, F)
    s = jnp.sum(eu * ei, axis=-1)                        # (bt,) f32
    out_ref[...] = s[None, :].astype(out_ref.dtype)      # (1, bt)


# --------------------------------------------------------------------------- #
# Wrapper
# --------------------------------------------------------------------------- #

def pointmf_forward(embed_user, embed_item, user, item, *, mode="auto"):
    """Forward pass of PointMF.

    embed_user: (user_num, factors)
    embed_item: (item_num, factors)
    user, item: (B,) integer indices
    mode: "auto" | "resident" | "stream"
    returns:    (B,) fp32 predictions (same semantics as PyTorch forward)
    """
    if mode not in ("auto", "resident", "stream"):
        raise ValueError(f"invalid mode: {mode}")

    B = int(user.shape[0])
    Vu, F = embed_user.shape
    Vi, Fi = embed_item.shape
    assert F == Fi, "factor dims must match"
    user = user.astype(jnp.int32)
    item = item.astype(jnp.int32)

    in_dtype = jnp.promote_types(embed_user.dtype, embed_item.dtype)
    itemsize = jnp.dtype(in_dtype).itemsize

    table_bytes = max(Vu, Vi) * F * itemsize
    can_reside = (max(Vu, Vi) <= _RESIDENT_MAX_ROWS
                  and table_bytes <= _RESIDENT_MAX_TABLE_BYTES)
    if mode == "auto":
        mode = "resident" if can_reside else "stream"

    if mode == "resident":
        # ----- tables resident in VMEM, in-kernel gather ------------------- #
        bt = _cap_for_megacore(_RESIDENT_MAX_BT, B)
        Bp = _round_up(B, bt)
        if Bp != B:
            user = jnp.pad(user, (0, Bp - B))
            item = jnp.pad(item, (0, Bp - B))
        u2 = user.reshape(Bp, 1)
        i2 = item.reshape(Bp, 1)

        grid = (Bp // bt,)
        out = pl.pallas_call(
            _resident_kernel,
            out_shape=jax.ShapeDtypeStruct((1, Bp), jnp.float32),
            grid_spec=pltpu.PrefetchScalarGridSpec(
                num_scalar_prefetch=0,
                grid=grid,
                in_specs=[
                    pl.BlockSpec((bt, 1), lambda i: (i, 0)),
                    pl.BlockSpec((bt, 1), lambda i: (i, 0)),
                    # Full tables, constant block index -> fetched once.
                    pl.BlockSpec((Vu, F), lambda i: (0, 0)),
                    pl.BlockSpec((Vi, F), lambda i: (0, 0)),
                ],
                out_specs=pl.BlockSpec((1, bt), lambda i: (0, i)),
            ),
            compiler_params=pltpu.CompilerParams(
                dimension_semantics=("parallel",),
                vmem_limit_bytes=32 * _MIB,
            ),
        )(u2, i2, embed_user, embed_item)
        return out.reshape(Bp)[:B]

    # ----- streaming fallback: gathered rows as lane-aligned blocks -------- #
    # Byte-budgeted batch tile: ~2 MiB per input per step (input dtype bytes),
    # lane-aligned, capped so the double-buffered pipeline (2 inputs x 2 bufs)
    # stays <= ~16 MiB, and capped for >=2 grid steps on v7x megacore.
    rows = (_STREAM_TARGET_BYTES // max(1, F * itemsize)) // _LANE * _LANE
    bt = max(_LANE, min(rows, _STREAM_MAX_ROWS))
    bt = _cap_for_megacore(bt, B)

    Bp = _round_up(B, bt)
    if Bp != B:
        user = jnp.pad(user, (0, Bp - B))
        item = jnp.pad(item, (0, Bp - B))

    # Embedding row gather; allow_input_fusion lets XLA fuse it into the
    # pallas_call inputs instead of materializing the gathered (Bp, F) arrays.
    eu = jnp.take(embed_user, user, axis=0)   # (Bp, F), native dtype
    ei = jnp.take(embed_item, item, axis=0)   # (Bp, F), native dtype

    grid = (Bp // bt,)
    out = pl.pallas_call(
        _stream_kernel,
        out_shape=jax.ShapeDtypeStruct((1, Bp), jnp.float32),
        grid_spec=pltpu.PrefetchScalarGridSpec(
            num_scalar_prefetch=0,
            grid=grid,
            in_specs=[
                pl.BlockSpec((bt, F), lambda i: (i, 0)),
                pl.BlockSpec((bt, F), lambda i: (i, 0)),
            ],
            out_specs=pl.BlockSpec((1, bt), lambda i: (0, i)),
        ),
        compiler_params=pltpu.CompilerParams(
            dimension_semantics=("parallel",),
            vmem_limit_bytes=32 * _MIB,
            allow_input_fusion=[True, True],
        ),
    )(eu, ei)
    return out.reshape(Bp)[:B]


def _reference(embed_user, embed_item, user, item):
    eu = jnp.take(embed_user, user, axis=0).astype(jnp.float32)
    ei = jnp.take(embed_item, item, axis=0).astype(jnp.float32)
    return jnp.sum(eu * ei, axis=-1)


if __name__ == "__main__":
    # Small, deterministic setup consistent with the module's __init__.
    user_num, item_num, factors = 64, 128, 128

    key = jax.random.PRNGKey(0)
    k_u, k_i, k1, k2, k3, k4 = jax.random.split(key, 6)

    # nn.init.normal_(weight, std=0.01)
    embed_user = 0.01 * jax.random.normal(k_u, (user_num, factors), jnp.float32)
    embed_item = 0.01 * jax.random.normal(k_i, (item_num, factors), jnp.float32)

    def run_and_check(batch, mode, ku, ki):
        user = jax.random.randint(ku, (batch,), 0, user_num, dtype=jnp.int32)
        item = jax.random.randint(ki, (batch,), 0, item_num, dtype=jnp.int32)
        pred = pointmf_forward(embed_user, embed_item, user, item, mode=mode)
        pred = jax.block_until_ready(pred)
        ref = _reference(embed_user, embed_item, user, item)
        assert pred.shape == (batch,), (mode, batch, pred.shape)
        assert jnp.allclose(pred, ref, atol=1e-6, rtol=1e-5), (mode, batch)

    # 1) small batch, auto -> table-resident in-kernel gather, single grid step
    run_and_check(16, "auto", k1, k2)
    # 2) non-multiple batch, resident path: padding + multi-step grid
    run_and_check(300, "resident", k3, k4)
    # 3) same batch through the large-vocab streaming fallback
    run_and_check(300, "stream", k3, k4)

    print("KERNEL_OK")
</pallas_src>

<mosaic_0001>
module attributes {stable_mosaic.version = 11 : i64} {
  func.func @_resident_kernel(%arg0: i32, %arg1: memref<128x1xi32, #tpu.memory_space<vmem>>, %arg2: memref<128x1xi32, #tpu.memory_space<vmem>>, %arg3: memref<64x128xf32, #tpu.memory_space<vmem>>, %arg4: memref<128x128xf32, #tpu.memory_space<vmem>>, %arg5: memref<1x128xf32, #tpu.memory_space<vmem>>) attributes {dimension_semantics = [#tpu.dimension_semantics<parallel>], iteration_bounds = array<i64: 1>, scalar_prefetch = 0 : i64, scratch_operands = 0 : i64, tpu.core_type = #tpu.core_type<tc>, window_params = [{transform_indices = @transform_0, window_bounds = array<i64: 128, 1>}, {transform_indices = @transform_1, window_bounds = array<i64: 128, 1>}, {pipeline_mode = #tpu.pipeline_mode<synchronous>, transform_indices = @transform_2, window_bounds = array<i64: 64, 128>}, {pipeline_mode = #tpu.pipeline_mode<synchronous>, transform_indices = @transform_3, window_bounds = array<i64: 128, 128>}, {transform_indices = @transform_4, window_bounds = array<i64: 1, 128>}]} {
    %c0 = arith.constant 0 : index
    %c0_0 = arith.constant 0 : index
    %0 = vector.load %arg1[%c0, %c0_0] : memref<128x1xi32, #tpu.memory_space<vmem>>, vector<128x1xi32>
    %1 = tpu.iota {dimensions = array<i32: 1>} : vector<128x64xi32>
    %2 = vector.broadcast %0 : vector<128x1xi32> to vector<128x64xi32>
    %3 = arith.cmpi eq, %2, %1 : vector<128x64xi32>
    %4 = arith.extui %3 : vector<128x64xi1> to vector<128x64xi32>
    %5 = arith.sitofp %4 : vector<128x64xi32> to vector<128x64xf32>
    %c0_1 = arith.constant 0 : index
    %c0_2 = arith.constant 0 : index
    %6 = vector.load %arg2[%c0_1, %c0_2] : memref<128x1xi32, #tpu.memory_space<vmem>>, vector<128x1xi32>
    %7 = tpu.iota {dimensions = array<i32: 1>} : vector<128x128xi32>
    %8 = vector.broadcast %6 : vector<128x1xi32> to vector<128x128xi32>
    %9 = arith.cmpi eq, %8, %7 : vector<128x128xi32>
    %10 = arith.extui %9 : vector<128x128xi1> to vector<128x128xi32>
    %11 = arith.sitofp %10 : vector<128x128xi32> to vector<128x128xf32>
    %c0_3 = arith.constant 0 : index
    %c0_4 = arith.constant 0 : index
    %12 = vector.load %arg3[%c0_3, %c0_4] : memref<64x128xf32, #tpu.memory_space<vmem>>, vector<64x128xf32>
    %cst = arith.constant dense<0.000000e+00> : vector<128x128xf32>
    %13 = tpu.matmul %5, %12, %cst {dimension_numbers = #tpu.dot_dimension_numbers<[1], [0], [0], [1], [0, 0, 1, 1], [], []>} : vector<128x64xf32>, vector<64x128xf32>, vector<128x128xf32> -> vector<128x128xf32>
    %c0_5 = arith.constant 0 : index
    %c0_6 = arith.constant 0 : index
    %14 = vector.load %arg4[%c0_5, %c0_6] : memref<128x128xf32, #tpu.memory_space<vmem>>, vector<128x128xf32>
    %cst_7 = arith.constant dense<0.000000e+00> : vector<128x128xf32>
    %15 = tpu.matmul %11, %14, %cst_7 {dimension_numbers = #tpu.dot_dimension_numbers<[1], [0], [0], [1], [0, 0, 1, 1], [], []>} : vector<128x128xf32>, vector<128x128xf32>, vector<128x128xf32> -> vector<128x128xf32>
    %16 = arith.mulf %13, %15 : vector<128x128xf32>
    %cst_8 = arith.constant dense<0.000000e+00> : vector<128xf32>
    %17 = vector.multi_reduction <add>, %16, %cst_8 [1] : vector<128x128xf32> to vector<128xf32>
    %18 = vector.shape_cast %17 : vector<128xf32> to vector<1x128xf32>
    %c0_9 = arith.constant 0 : index
    %c0_10 = arith.constant 0 : index
    %19 = vector.load %arg5[%c0_9, %c0_10] : memref<1x128xf32, #tpu.memory_space<vmem>>, vector<1x128xf32>
    tpu.vector_store %arg5[%c0_9, %c0_10], %18 {strides = array<i32>} : memref<1x128xf32, #tpu.memory_space<vmem>>, vector<1x128xf32>,
    return
  }
  func.func @transform_0(%arg0: i32) -> (i32, i32) {
    %c0_i32 = arith.constant 0 : i32
    %c0_i32_0 = arith.constant 0 : i32
    return %arg0, %c0_i32 : i32, i32
  }
  func.func @transform_1(%arg0: i32) -> (i32, i32) {
    %c0_i32 = arith.constant 0 : i32
    %c0_i32_0 = arith.constant 0 : i32
    return %arg0, %c0_i32 : i32, i32
  }
  func.func @transform_2(%arg0: i32) -> (i32, i32) {
    %c0_i32 = arith.constant 0 : i32
    %c0_i32_0 = arith.constant 0 : i32
    %c0_i32_1 = arith.constant 0 : i32
    return %c0_i32, %c0_i32_0 : i32, i32
  }
  func.func @transform_3(%arg0: i32) -> (i32, i32) {
    %c0_i32 = arith.constant 0 : i32
    %c0_i32_0 = arith.constant 0 : i32
    %c0_i32_1 = arith.constant 0 : i32
    return %c0_i32, %c0_i32_0 : i32, i32
  }
  func.func @transform_4(%arg0: i32) -> (i32, i32) {
    %c0_i32 = arith.constant 0 : i32
    %c0_i32_0 = arith.constant 0 : i32
    return %c0_i32, %arg0 : i32, i32
  }
}

</mosaic_0001>

<llo_original>
// kernel: tpu_custom_call.1
$region0: #{tpu_custom_call.1}
  #allocation0 [shape = 'u32[]', space=smem, size = 0x4, offset = 0x4, fixed_abs, tag = 'smem constant byte address 0x4 - core index']
  #allocation1 [shape = 'u32[144,128]{1,0:T(1,128)}', space=vmem, size = 0x12000, scoped, tag = 'internal scratch']
  %s0 = inlined_call_operand.vmem [shape: s32[128,1], index: 0, kind: input, shape index: {}]
  %s1 = inlined_call_operand.vmem [shape: s32[128,1], index: 1, kind: input, shape index: {}]
  %s2 = inlined_call_operand.vmem [shape: f32[64,128], index: 2, kind: input, shape index: {}]
  %s3 = inlined_call_operand.vmem [shape: f32[128,128], index: 3, kind: input, shape index: {}]
  %s4 = inlined_call_operand.hbm [shape: f32[1,128], index: 4, kind: output, shape index: {}]
  %s5 = sld [smem:[#allocation0]]
  $region26: #{tpu_custom_call.1} parent=0
    _
  %s7 = ssub.s32 1, %s5
  %s8 = scalar_select 0, %s7, %s5
  $region1: #{tpu_custom_call.1} parent=0
    #allocation2 [shape = 'u8[512]{0}', space=vmem, size = 0x400, scoped, tag = 'output window, operand 0, single buffered']
    #allocation3 [shape = 's32[1]{0}', space=sflag, size = 0x4, scoped, tag = 'scoped memory for tpu_custom_call.1']
    %9 = vsyncpa [#allocation3], 0
    // Predicated region
    $region2: #{tpu_custom_call.1} parent=1 // pred_check
      _
    $region3: #{tpu_custom_call.1} parent=1 // pred_check_branch
      %11 = sbr.rel (0) target = $region5
    $region4: #{tpu_custom_call.1} parent=1 // pred_region
      _
    $region5: #{tpu_custom_call.1} parent=1 // pred_fallthru
      _
    // Predicated region
    $region6: #{tpu_custom_call.1} parent=1 // pred_check
      _
    $region7: #{tpu_custom_call.1} parent=1 // pred_check_branch
      %13 = sbr.rel (0) target = $region9
    $region8: #{tpu_custom_call.1} parent=1 // pred_region
      _
    $region9: #{tpu_custom_call.1} parent=1 // pred_fallthru
      _
    // Predicated region
    $region10: #{tpu_custom_call.1} parent=1 // pred_check
      _
    $region11: #{tpu_custom_call.1} parent=1 // pred_check_branch
      %15 = sbr.rel (0) target = $region13
    $region12: #{tpu_custom_call.1} parent=1 // pred_region
      _
    $region13: #{tpu_custom_call.1} parent=1 // pred_fallthru
      _
    // Predicated region
    $region14: #{tpu_custom_call.1} parent=1 // pred_check
      _
    $region15: #{tpu_custom_call.1} parent=1 // pred_check_branch
      %17 = sbr.rel (0) target = $region17
    $region16: #{tpu_custom_call.1} parent=1 // pred_region
      _
    $region17: #{tpu_custom_call.1} parent=1 // pred_fallthru
      _
    %v18 = vld [vmem:[%s0] sm:$0xff]
    %v19 = vld [vmem:[%s0 + $0x8] sm:$0xff]
    %v20 = vld [vmem:[%s0 + $0x10] sm:$0xff]
    %v21 = vld [vmem:[%s0 + $0x18] sm:$0xff]
    %v22 = vld [vmem:[%s0 + $0x20] sm:$0xff]
    %v23 = vld [vmem:[%s0 + $0x28] sm:$0xff]
    %v24 = vld [vmem:[%s0 + $0x30] sm:$0xff]
    %v25 = vld [vmem:[%s0 + $0x38] sm:$0xff]
    %v26 = vld [vmem:[%s0 + $0x40] sm:$0xff]
    %v27 = vld [vmem:[%s0 + $0x48] sm:$0xff]
    %v28 = vld [vmem:[%s0 + $0x50] sm:$0xff]
    %v29 = vld [vmem:[%s0 + $0x58] sm:$0xff]
    %v30 = vld [vmem:[%s0 + $0x60] sm:$0xff]
    %v31 = vld [vmem:[%s0 + $0x68] sm:$0xff]
    %v32 = vld [vmem:[%s0 + $0x70] sm:$0xff]
    %v33 = vld [vmem:[%s0 + $0x78] sm:$0xff]
    %v34 = vlaneseq
    %v35 = vand.u32 %v34, 127
    %36 = vset.pattern.permute.xlu0 0
    %37 = vperm.xlu0 %36, %v18
    %v38 = vpop.permute.xlu0 %37
    %39 = vset.pattern.permute.xlu0 0
    %40 = vperm.xlu0 %39, %v19
    %v41 = vpop.permute.xlu0 %40
    %42 = vset.pattern.permute.xlu0 0
    %43 = vperm.xlu0 %42, %v20
    %v44 = vpop.permute.xlu0 %43
    %45 = vset.pattern.permute.xlu0 0
    %46 = vperm.xlu0 %45, %v21
    %v47 = vpop.permute.xlu0 %46
    %48 = vset.pattern.permute.xlu0 0
    %49 = vperm.xlu0 %48, %v22
    %v50 = vpop.permute.xlu0 %49
    %51 = vset.pattern.permute.xlu0 0
    %52 = vperm.xlu0 %51, %v23
    %v53 = vpop.permute.xlu0 %52
    %54 = vset.pattern.permute.xlu0 0
    %55 = vperm.xlu0 %54, %v24
    %v56 = vpop.permute.xlu0 %55
    %57 = vset.pattern.permute.xlu0 0
    %58 = vperm.xlu0 %57, %v25
    %v59 = vpop.permute.xlu0 %58
    %60 = vset.pattern.permute.xlu0 0
    %61 = vperm.xlu0 %60, %v26
    %v62 = vpop.permute.xlu0 %61
    %63 = vset.pattern.permute.xlu0 0
    %64 = vperm.xlu0 %63, %v27
    %v65 = vpop.permute.xlu0 %64
    %66 = vset.pattern.permute.xlu0 0
    %67 = vperm.xlu0 %66, %v28
    %v68 = vpop.permute.xlu0 %67
    %69 = vset.pattern.permute.xlu0 0
    %70 = vperm.xlu0 %69, %v29
    %v71 = vpop.permute.xlu0 %70
    %72 = vset.pattern.permute.xlu0 0
    %73 = vperm.xlu0 %72, %v30
    %v74 = vpop.permute.xlu0 %73
    %75 = vset.pattern.permute.xlu0 0
    %76 = vperm.xlu0 %75, %v31
    %v77 = vpop.permute.xlu0 %76
    %78 = vset.pattern.permute.xlu0 0
    %79 = vperm.xlu0 %78, %v32
    %v80 = vpop.permute.xlu0 %79
    %81 = vset.pattern.permute.xlu0 0
    %82 = vperm.xlu0 %81, %v33
    %v83 = vpop.permute.xlu0 %82
    %vm84 = vcmp.eq.s32.totalorder %v38, %v35
    %vm85 = vcmp.eq.s32.totalorder %v41, %v35
    %vm86 = vcmp.eq.s32.totalorder %v44, %v35
    %vm87 = vcmp.eq.s32.totalorder %v47, %v35
    %vm88 = vcmp.eq.s32.totalorder %v50, %v35
    %vm89 = vcmp.eq.s32.totalorder %v53, %v35
    %vm90 = vcmp.eq.s32.totalorder %v56, %v35
    %vm91 = vcmp.eq.s32.totalorder %v59, %v35
    %vm92 = vcmp.eq.s32.totalorder %v62, %v35
    %vm93 = vcmp.eq.s32.totalorder %v65, %v35
    %vm94 = vcmp.eq.s32.totalorder %v68, %v35
    %vm95 = vcmp.eq.s32.totalorder %v71, %v35
    %vm96 = vcmp.eq.s32.totalorder %v74, %v35
    %vm97 = vcmp.eq.s32.totalorder %v77, %v35
    %vm98 = vcmp.eq.s32.totalorder %v80, %v35
    %vm99 = vcmp.eq.s32.totalorder %v83, %v35
    %v100 = vsel %vm84, 1, 0
    %v101 = vsel %vm85, 1, 0
    %v102 = vsel %vm86, 1, 0
    %v103 = vsel %vm87, 1, 0
    %v104 = vsel %vm88, 1, 0
    %v105 = vsel %vm89, 1, 0
    %v106 = vsel %vm90, 1, 0
    %v107 = vsel %vm91, 1, 0
    %v108 = vsel %vm92, 1, 0
    %v109 = vsel %vm93, 1, 0
    %v110 = vsel %vm94, 1, 0
    %v111 = vsel %vm95, 1, 0
    %v112 = vsel %vm96, 1, 0
    %v113 = vsel %vm97, 1, 0
    %v114 = vsel %vm98, 1, 0
    %v115 = vsel %vm99, 1, 0
    %v116 = vcvt.s32.f32 %v100
    %v117 = vcvt.s32.f32 %v101
    %v118 = vcvt.s32.f32 %v102
    %v119 = vcvt.s32.f32 %v103
    %v120 = vcvt.s32.f32 %v104
    %v121 = vcvt.s32.f32 %v105
    %v122 = vcvt.s32.f32 %v106
    %v123 = vcvt.s32.f32 %v107
    %v124 = vcvt.s32.f32 %v108
    %v125 = vcvt.s32.f32 %v109
    %v126 = vcvt.s32.f32 %v110
    %v127 = vcvt.s32.f32 %v111
    %v128 = vcvt.s32.f32 %v112
    %v129 = vcvt.s32.f32 %v113
    %v130 = vcvt.s32.f32 %v114
    %v131 = vcvt.s32.f32 %v115
    %v132 = vld [vmem:[%s1] sm:$0xff]
    %v133 = vld [vmem:[%s1 + $0x8] sm:$0xff]
    %v134 = vld [vmem:[%s1 + $0x10] sm:$0xff]
    %v135 = vld [vmem:[%s1 + $0x18] sm:$0xff]
    %v136 = vld [vmem:[%s1 + $0x20] sm:$0xff]
    %v137 = vld [vmem:[%s1 + $0x28] sm:$0xff]
    %v138 = vld [vmem:[%s1 + $0x30] sm:$0xff]
    %v139 = vld [vmem:[%s1 + $0x38] sm:$0xff]
    %v140 = vld [vmem:[%s1 + $0x40] sm:$0xff]
    %v141 = vld [vmem:[%s1 + $0x48] sm:$0xff]
    %v142 = vld [vmem:[%s1 + $0x50] sm:$0xff]
    %v143 = vld [vmem:[%s1 + $0x58] sm:$0xff]
    %v144 = vld [vmem:[%s1 + $0x60] sm:$0xff]
    %v145 = vld [vmem:[%s1 + $0x68] sm:$0xff]
    %v146 = vld [vmem:[%s1 + $0x70] sm:$0xff]
    %v147 = vld [vmem:[%s1 + $0x78] sm:$0xff]
    %148 = vset.pattern.permute.xlu0 0
    %149 = vperm.xlu0 %148, %v132
    %v150 = vpop.permute.xlu0 %149
    %151 = vset.pattern.permute.xlu0 0
    %152 = vperm.xlu0 %151, %v133
    %v153 = vpop.permute.xlu0 %152
    %154 = vset.pattern.permute.xlu0 0
    %155 = vperm.xlu0 %154, %v134
    %v156 = vpop.permute.xlu0 %155
    %157 = vset.pattern.permute.xlu0 0
    %158 = vperm.xlu0 %157, %v135
    %v159 = vpop.permute.xlu0 %158
    %160 = vset.pattern.permute.xlu0 0
    %161 = vperm.xlu0 %160, %v136
    %v162 = vpop.permute.xlu0 %161
    %163 = vset.pattern.permute.xlu0 0
    %164 = vperm.xlu0 %163, %v137
    %v165 = vpop.permute.xlu0 %164
    %166 = vset.pattern.permute.xlu0 0
    %167 = vperm.xlu0 %166, %v138
    %v168 = vpop.permute.xlu0 %167
    %169 = vset.pattern.permute.xlu0 0
    %170 = vperm.xlu0 %169, %v139
    %v171 = vpop.permute.xlu0 %170
    %172 = vset.pattern.permute.xlu0 0
    %173 = vperm.xlu0 %172, %v140
    %v174 = vpop.permute.xlu0 %173
    %175 = vset.pattern.permute.xlu0 0
    %176 = vperm.xlu0 %175, %v141
    %v177 = vpop.permute.xlu0 %176
    %178 = vset.pattern.permute.xlu0 0
    %179 = vperm.xlu0 %178, %v142
    %v180 = vpop.permute.xlu0 %179
    %181 = vset.pattern.permute.xlu0 0
    %182 = vperm.xlu0 %181, %v143
    %v183 = vpop.permute.xlu0 %182
    %184 = vset.pattern.permute.xlu0 0
    %185 = vperm.xlu0 %184, %v144
    %v186 = vpop.permute.xlu0 %185
    %187 = vset.pattern.permute.xlu0 0
    %188 = vperm.xlu0 %187, %v145
    %v189 = vpop.permute.xlu0 %188
    %190 = vset.pattern.permute.xlu0 0
    %191 = vperm.xlu0 %190, %v146
    %v192 = vpop.permute.xlu0 %191
    %193 = vset.pattern.permute.xlu0 0
    %194 = vperm.xlu0 %193, %v147
    %v195 = vpop.permute.xlu0 %194
    %vm196 = vcmp.eq.s32.totalorder %v150, %v35
    %vm197 = vcmp.eq.s32.totalorder %v153, %v35
    %vm198 = vcmp.eq.s32.totalorder %v156, %v35
    %vm199 = vcmp.eq.s32.totalorder %v159, %v35
    %vm200 = vcmp.eq.s32.totalorder %v162, %v35
    %vm201 = vcmp.eq.s32.totalorder %v165, %v35
    %vm202 = vcmp.eq.s32.totalorder %v168, %v35
    %vm203 = vcmp.eq.s32.totalorder %v171, %v35
    %vm204 = vcmp.eq.s32.totalorder %v174, %v35
    %vm205 = vcmp.eq.s32.totalorder %v177, %v35
    %vm206 = vcmp.eq.s32.totalorder %v180, %v35
    %vm207 = vcmp.eq.s32.totalorder %v183, %v35
    %vm208 = vcmp.eq.s32.totalorder %v186, %v35
    %vm209 = vcmp.eq.s32.totalorder %v189, %v35
    %vm210 = vcmp.eq.s32.totalorder %v192, %v35
    %vm211 = vcmp.eq.s32.totalorder %v195, %v35
    %v212 = vsel %vm196, 1, 0
    %v213 = vsel %vm197, 1, 0
    %v214 = vsel %vm198, 1, 0
    %v215 = vsel %vm199, 1, 0
    %v216 = vsel %vm200, 1, 0
    %v217 = vsel %vm201, 1, 0
    %v218 = vsel %vm202, 1, 0
    %v219 = vsel %vm203, 1, 0
    %v220 = vsel %vm204, 1, 0
    %v221 = vsel %vm205, 1, 0
    %v222 = vsel %vm206, 1, 0
    %v223 = vsel %vm207, 1, 0
    %v224 = vsel %vm208, 1, 0
    %v225 = vsel %vm209, 1, 0
    %v226 = vsel %vm210, 1, 0
    %v227 = vsel %vm211, 1, 0
    %v228 = vcvt.s32.f32 %v212
    %v229 = vcvt.s32.f32 %v213
    %v230 = vcvt.s32.f32 %v214
    %v231 = vcvt.s32.f32 %v215
    %v232 = vcvt.s32.f32 %v216
    %v233 = vcvt.s32.f32 %v217
    %v234 = vcvt.s32.f32 %v218
    %v235 = vcvt.s32.f32 %v219
    %v236 = vcvt.s32.f32 %v220
    %v237 = vcvt.s32.f32 %v221
    %v238 = vcvt.s32.f32 %v222
    %v239 = vcvt.s32.f32 %v223
    %v240 = vcvt.s32.f32 %v224
    %v241 = vcvt.s32.f32 %v225
    %v242 = vcvt.s32.f32 %v226
    %v243 = vcvt.s32.f32 %v227
    %v244 = vld [vmem:[%s2] sm:$0xff]
    %v245 = vld [vmem:[%s2 + $0x8] sm:$0xff]
    %v246 = vld [vmem:[%s2 + $0x10] sm:$0xff]
    %v247 = vld [vmem:[%s2 + $0x18] sm:$0xff]
    %v248 = vld [vmem:[%s2 + $0x20] sm:$0xff]
    %v249 = vld [vmem:[%s2 + $0x28] sm:$0xff]
    %v250 = vld [vmem:[%s2 + $0x30] sm:$0xff]
    %v251 = vld [vmem:[%s2 + $0x38] sm:$0xff]
    %vm252 = vcmask 523264
    %v254 = vsel %vm252, %v116, 0
    %v257 = vsel %vm252, %v117, 0
    %v260 = vsel %vm252, %v118, 0
    %v263 = vsel %vm252, %v119, 0
    %v266 = vsel %vm252, %v120, 0
    %v269 = vsel %vm252, %v121, 0
    %v272 = vsel %vm252, %v122, 0
    %v275 = vsel %vm252, %v123, 0
    %v278 = vsel %vm252, %v124, 0
    %v281 = vsel %vm252, %v125, 0
    %v284 = vsel %vm252, %v126, 0
    %v287 = vsel %vm252, %v127, 0
    %v290 = vsel %vm252, %v128, 0
    %v293 = vsel %vm252, %v129, 0
    %v296 = vsel %vm252, %v130, 0
    %v299 = vsel %vm252, %v131, 0
    %301 = vmatprep.subr.mxu0 0.0
    %302 = vmatpush1.msra.mxu0 0.0
    %303 = vmatprep.subr.mxu0 0.0
    %304 = vmatpush1.msra.mxu0 0.0
    %305 = vmatprep.subr.mxu0 0.0
    %306 = vmatpush1.msra.mxu0 0.0
    %307 = vmatprep.subr.mxu0 0.0
    %308 = vmatpush1.msra.mxu0 0.0
    %309 = vmatprep.subr.mxu0 0.0
    %310 = vmatpush1.msra.mxu0 0.0
    %311 = vmatprep.subr.mxu0 0.0
    %312 = vmatpush1.msra.mxu0 0.0
    %313 = vmatprep.subr.mxu0 0.0
    %314 = vmatpush1.msra.mxu0 0.0
    %315 = vmatprep.subr.mxu0 0.0
    %316 = vmatpush1.msra.mxu0 0.0
    %317 = vmatprep.subr.mxu0 0.0
    %318 = vmatpush1.msra.mxu0 %v251
    %319 = vmatprep.subr.mxu0 0.0
    %320 = vmatpush1.msra.mxu0 %v250
    %321 = vmatprep.subr.mxu0 0.0
    %322 = vmatpush1.msra.mxu0 %v249
    %323 = vmatprep.subr.mxu0 0.0
    %324 = vmatpush1.msra.mxu0 %v248
    %325 = vmatprep.subr.mxu0 0.0
    %326 = vmatpush1.msra.mxu0 %v247
    %327 = vmatprep.subr.mxu0 0.0
    %328 = vmatpush1.msra.mxu0 %v246
    %329 = vmatprep.subr.mxu0 0.0
    %330 = vmatpush1.msra.mxu0 %v245
    %331 = vmatprep.subr.mxu0 0.0
    %332 = vmatpush1.msra.mxu0 %v244
    %333 = vmatprep.subr.mxu0 0.0
    %334 = vmatpush2.msra.mxu0 0.0
    %335 = vmatprep.subr.mxu0 0.0
    %336 = vmatpush2.msra.mxu0 0.0
    %337 = vmatprep.subr.mxu0 0.0
    %338 = vmatpush2.msra.mxu0 0.0
    %339 = vmatprep.subr.mxu0 0.0
    %340 = vmatpush2.msra.mxu0 0.0
    %341 = vmatprep.subr.mxu0 0.0
    %342 = vmatpush2.msra.mxu0 0.0
    %343 = vmatprep.subr.mxu0 0.0
    %344 = vmatpush2.msra.mxu0 0.0
    %345 = vmatprep.subr.mxu0 0.0
    %346 = vmatpush2.msra.mxu0 0.0
    %347 = vmatprep.subr.mxu0 0.0
    %348 = vmatpush2.msra.mxu0 0.0
    %349 = vmatprep.subr.mxu0 0.0
    %350 = vmatpush2.msra.mxu0 0.0
    %351 = vmatprep.subr.mxu0 0.0
    %352 = vmatpush2.msra.mxu0 0.0
    %353 = vmatprep.subr.mxu0 0.0
    %354 = vmatpush2.msra.mxu0 0.0
    %355 = vmatprep.subr.mxu0 0.0
    %356 = vmatpush2.msra.mxu0 0.0
    %357 = vmatprep.subr.mxu0 0.0
    %358 = vmatpush2.msra.mxu0 0.0
    %359 = vmatprep.subr.mxu0 0.0
    %360 = vmatpush2.msra.mxu0 0.0
    %361 = vmatprep.subr.mxu0 0.0
    %362 = vmatpush2.msra.mxu0 0.0
    %363 = vmatprep.subr.mxu0 0.0
    %364 = vmatpush2.msra.mxu0 0.0
    %365 = vmatprep.mubr.f32.mxu0 0.0
    %366 = vmatmul.mubr.f32.gmra.mxu0 %v254
    %v367 = vpop.f32.mrf.mxu0
    %v368 = vadd.f32 0.0, %v367
    %v369 = vpop.f32.mrf.mxu0
    %370 = vmatprep.mubr.f32.mxu0 0.0
    %371 = vmatmul.mubr.f32.gmra.mxu0 %v257
    %v372 = vpop.f32.mrf.mxu0
    %v373 = vadd.f32 0.0, %v372
    %v374 = vpop.f32.mrf.mxu0
    %375 = vmatprep.mubr.f32.mxu0 0.0
    %376 = vmatmul.mubr.f32.gmra.mxu0 %v260
    %v377 = vpop.f32.mrf.mxu0
    %v378 = vadd.f32 0.0, %v377
    %v379 = vpop.f32.mrf.mxu0
    %380 = vmatprep.mubr.f32.mxu0 0.0
    %381 = vmatmul.mubr.f32.gmra.mxu0 %v263
    %v382 = vpop.f32.mrf.mxu0
    %v383 = vadd.f32 0.0, %v382
    %v384 = vpop.f32.mrf.mxu0
    %385 = vmatprep.mubr.f32.mxu0 0.0
    %386 = vmatmul.mubr.f32.gmra.mxu0 %v266
    %v387 = vpop.f32.mrf.mxu0
    %v388 = vadd.f32 0.0, %v387
    %v389 = vpop.f32.mrf.mxu0
    %390 = vmatprep.mubr.f32.mxu0 0.0
    %391 = vmatmul.mubr.f32.gmra.mxu0 %v269
    %v392 = vpop.f32.mrf.mxu0
    %v393 = vadd.f32 0.0, %v392
    %v394 = vpop.f32.mrf.mxu0
    %395 = vmatprep.mubr.f32.mxu0 0.0
    %396 = vmatmul.mubr.f32.gmra.mxu0 %v272
    %v397 = vpop.f32.mrf.mxu0
    %v398 = vadd.f32 0.0, %v397
    %v399 = vpop.f32.mrf.mxu0
    %400 = vmatprep.mubr.f32.mxu0 0.0
    %401 = vmatmul.mubr.f32.gmra.mxu0 %v275
    %v402 = vpop.f32.mrf.mxu0
    %v403 = vadd.f32 0.0, %v402
    %v404 = vpop.f32.mrf.mxu0
    %405 = vmatprep.mubr.f32.mxu0 0.0
    %406 = vmatmul.mubr.f32.gmra.mxu0 %v278
    %v407 = vpop.f32.mrf.mxu0
    %v408 = vadd.f32 0.0, %v407
    %v409 = vpop.f32.mrf.mxu0
    %410 = vmatprep.mubr.f32.mxu0 0.0
    %411 = vmatmul.mubr.f32.gmra.mxu0 %v281
    %v412 = vpop.f32.mrf.mxu0
    %v413 = vadd.f32 0.0, %v412
    %v414 = vpop.f32.mrf.mxu0
    %415 = vmatprep.mubr.f32.mxu0 0.0
    %416 = vmatmul.mubr.f32.gmra.mxu0 %v284
    %v417 = vpop.f32.mrf.mxu0
    %v418 = vadd.f32 0.0, %v417
    %v419 = vpop.f32.mrf.mxu0
    %420 = vmatprep.mubr.f32.mxu0 0.0
    %421 = vmatmul.mubr.f32.gmra.mxu0 %v287
    %v422 = vpop.f32.mrf.mxu0
    %v423 = vadd.f32 0.0, %v422
    %v424 = vpop.f32.mrf.mxu0
    %425 = vmatprep.mubr.f32.mxu0 0.0
    %426 = vmatmul.mubr.f32.gmra.mxu0 %v290
    %v427 = vpop.f32.mrf.mxu0
    %v428 = vadd.f32 0.0, %v427
    %v429 = vpop.f32.mrf.mxu0
    %430 = vmatprep.mubr.f32.mxu0 0.0
    %431 = vmatmul.mubr.f32.gmra.mxu0 %v293
    %v432 = vpop.f32.mrf.mxu0
    %v433 = vadd.f32 0.0, %v432
    %v434 = vpop.f32.mrf.mxu0
    %435 = vmatprep.mubr.f32.mxu0 0.0
    %436 = vmatmul.mubr.f32.gmra.mxu0 %v296
    %v437 = vpop.f32.mrf.mxu0
    %v438 = vadd.f32 0.0, %v437
    %v439 = vpop.f32.mrf.mxu0
    %440 = vmatprep.mubr.f32.mxu0 0.0
    %441 = vmatmul.mubr.f32.gmra.mxu0 %v299
    %v442 = vpop.f32.mrf.mxu0
    %v443 = vadd.f32 0.0, %v442
    %v444 = vpop.f32.mrf.mxu0
    %445 = vdwg.mxu0
    %v446 = vld [vmem:[%s3] sm:$0xff]
    %v447 = vld [vmem:[%s3 + $0x8] sm:$0xff]
    %v448 = vld [vmem:[%s3 + $0x10] sm:$0xff]
    %v449 = vld [vmem:[%s3 + $0x18] sm:$0xff]
    %v450 = vld [vmem:[%s3 + $0x20] sm:$0xff]
    %v451 = vld [vmem:[%s3 + $0x28] sm:$0xff]
    %v452 = vld [vmem:[%s3 + $0x30] sm:$0xff]
    %v453 = vld [vmem:[%s3 + $0x38] sm:$0xff]
    %v454 = vld [vmem:[%s3 + $0x40] sm:$0xff]
    %v455 = vld [vmem:[%s3 + $0x48] sm:$0xff]
    %v456 = vld [vmem:[%s3 + $0x50] sm:$0xff]
    %v457 = vld [vmem:[%s3 + $0x58] sm:$0xff]
    %v458 = vld [vmem:[%s3 + $0x60] sm:$0xff]
    %v459 = vld [vmem:[%s3 + $0x68] sm:$0xff]
    %v460 = vld [vmem:[%s3 + $0x70] sm:$0xff]
    %v461 = vld [vmem:[%s3 + $0x78] sm:$0xff]
    %462 = vmatprep.subr.mxu0 0.0
    %463 = vmatpush1.msra.mxu0 %v461
    %464 = vmatprep.subr.mxu0 0.0
    %465 = vmatpush1.msra.mxu0 %v460
    %466 = vmatprep.subr.mxu0 0.0
    %467 = vmatpush1.msra.mxu0 %v459
    %468 = vmatprep.subr.mxu0 0.0
    %469 = vmatpush1.msra.mxu0 %v458
    %470 = vmatprep.subr.mxu0 0.0
    %471 = vmatpush1.msra.mxu0 %v457
    %472 = vmatprep.subr.mxu0 0.0
    %473 = vmatpush1.msra.mxu0 %v456
    %474 = vmatprep.subr.mxu0 0.0
    %475 = vmatpush1.msra.mxu0 %v455
    %476 = vmatprep.subr.mxu0 0.0
    %477 = vmatpush1.msra.mxu0 %v454
    %478 = vmatprep.subr.mxu0 0.0
    %479 = vmatpush1.msra.mxu0 %v453
    %480 = vmatprep.subr.mxu0 0.0
    %481 = vmatpush1.msra.mxu0 %v452
    %482 = vmatprep.subr.mxu0 0.0
    %483 = vmatpush1.msra.mxu0 %v451
    %484 = vmatprep.subr.mxu0 0.0
    %485 = vmatpush1.msra.mxu0 %v450
    %486 = vmatprep.subr.mxu0 0.0
    %487 = vmatpush1.msra.mxu0 %v449
    %488 = vmatprep.subr.mxu0 0.0
    %489 = vmatpush1.msra.mxu0 %v448
    %490 = vmatprep.subr.mxu0 0.0
    %491 = vmatpush1.msra.mxu0 %v447
    %492 = vmatprep.subr.mxu0 0.0
    %493 = vmatpush1.msra.mxu0 %v446
    %494 = vmatprep.subr.mxu0 0.0
    %495 = vmatpush2.msra.mxu0 0.0
    %496 = vmatprep.subr.mxu0 0.0
    %497 = vmatpush2.msra.mxu0 0.0
    %498 = vmatprep.subr.mxu0 0.0
    %499 = vmatpush2.msra.mxu0 0.0
    %500 = vmatprep.subr.mxu0 0.0
    %501 = vmatpush2.msra.mxu0 0.0
    %502 = vmatprep.subr.mxu0 0.0
    %503 = vmatpush2.msra.mxu0 0.0
    %504 = vmatprep.subr.mxu0 0.0
    %505 = vmatpush2.msra.mxu0 0.0
    %506 = vmatprep.subr.mxu0 0.0
    %507 = vmatpush2.msra.mxu0 0.0
    %508 = vmatprep.subr.mxu0 0.0
    %509 = vmatpush2.msra.mxu0 0.0
    %510 = vmatprep.subr.mxu0 0.0
    %511 = vmatpush2.msra.mxu0 0.0
    %512 = vmatprep.subr.mxu0 0.0
    %513 = vmatpush2.msra.mxu0 0.0
    %514 = vmatprep.subr.mxu0 0.0
    %515 = vmatpush2.msra.mxu0 0.0
    %516 = vmatprep.subr.mxu0 0.0
    %517 = vmatpush2.msra.mxu0 0.0
    %518 = vmatprep.subr.mxu0 0.0
    %519 = vmatpush2.msra.mxu0 0.0
    %520 = vmatprep.subr.mxu0 0.0
    %521 = vmatpush2.msra.mxu0 0.0
    %522 = vmatprep.subr.mxu0 0.0
    %523 = vmatpush2.msra.mxu0 0.0
    %524 = vmatprep.subr.mxu0 0.0
    %525 = vmatpush2.msra.mxu0 0.0
    %526 = vmatprep.mubr.f32.mxu0 0.0
    %527 = vmatmul.mubr.f32.gmra.mxu0 %v228
    %v528 = vpop.f32.mrf.mxu0
    %v529 = vadd.f32 0.0, %v528
    %v530 = vpop.f32.mrf.mxu0
    %531 = vmatprep.mubr.f32.mxu0 0.0
    %532 = vmatmul.mubr.f32.gmra.mxu0 %v229
    %v533 = vpop.f32.mrf.mxu0
    %v534 = vadd.f32 0.0, %v533
    %v535 = vpop.f32.mrf.mxu0
    %536 = vmatprep.mubr.f32.mxu0 0.0
    %537 = vmatmul.mubr.f32.gmra.mxu0 %v230
    %v538 = vpop.f32.mrf.mxu0
    %v539 = vadd.f32 0.0, %v538
    %v540 = vpop.f32.mrf.mxu0
    %541 = vmatprep.mubr.f32.mxu0 0.0
    %542 = vmatmul.mubr.f32.gmra.mxu0 %v231
    %v543 = vpop.f32.mrf.mxu0
    %v544 = vadd.f32 0.0, %v543
    %v545 = vpop.f32.mrf.mxu0
    %546 = vmatprep.mubr.f32.mxu0 0.0
    %547 = vmatmul.mubr.f32.gmra.mxu0 %v232
    %v548 = vpop.f32.mrf.mxu0
    %v549 = vadd.f32 0.0, %v548
    %v550 = vpop.f32.mrf.mxu0
    %551 = vmatprep.mubr.f32.mxu0 0.0
    %552 = vmatmul.mubr.f32.gmra.mxu0 %v233
    %v553 = vpop.f32.mrf.mxu0
    %v554 = vadd.f32 0.0, %v553
    %v555 = vpop.f32.mrf.mxu0
    %556 = vmatprep.mubr.f32.mxu0 0.0
    %557 = vmatmul.mubr.f32.gmra.mxu0 %v234
    %v558 = vpop.f32.mrf.mxu0
    %v559 = vadd.f32 0.0, %v558
    %v560 = vpop.f32.mrf.mxu0
    %561 = vmatprep.mubr.f32.mxu0 0.0
    %562 = vmatmul.mubr.f32.gmra.mxu0 %v235
    %v563 = vpop.f32.mrf.mxu0
    %v564 = vadd.f32 0.0, %v563
    %v565 = vpop.f32.mrf.mxu0
    %566 = vmatprep.mubr.f32.mxu0 0.0
    %567 = vmatmul.mubr.f32.gmra.mxu0 %v236
    %v568 = vpop.f32.mrf.mxu0
    %v569 = vadd.f32 0.0, %v568
    %v570 = vpop.f32.mrf.mxu0
    %571 = vmatprep.mubr.f32.mxu0 0.0
    %572 = vmatmul.mubr.f32.gmra.mxu0 %v237
    %v573 = vpop.f32.mrf.mxu0
    %v574 = vadd.f32 0.0, %v573
    %v575 = vpop.f32.mrf.mxu0
    %576 = vmatprep.mubr.f32.mxu0 0.0
    %577 = vmatmul.mubr.f32.gmra.mxu0 %v238
    %v578 = vpop.f32.mrf.mxu0
    %v579 = vadd.f32 0.0, %v578
    %v580 = vpop.f32.mrf.mxu0
    %581 = vmatprep.mubr.f32.mxu0 0.0
    %582 = vmatmul.mubr.f32.gmra.mxu0 %v239
    %v583 = vpop.f32.mrf.mxu0
    %v584 = vadd.f32 0.0, %v583
    %v585 = vpop.f32.mrf.mxu0
    %586 = vmatprep.mubr.f32.mxu0 0.0
    %587 = vmatmul.mubr.f32.gmra.mxu0 %v240
    %v588 = vpop.f32.mrf.mxu0
    %v589 = vadd.f32 0.0, %v588
    %v590 = vpop.f32.mrf.mxu0
    %591 = vmatprep.mubr.f32.mxu0 0.0
    %592 = vmatmul.mubr.f32.gmra.mxu0 %v241
    %v593 = vpop.f32.mrf.mxu0
    %v594 = vadd.f32 0.0, %v593
    %v595 = vpop.f32.mrf.mxu0
    %596 = vmatprep.mubr.f32.mxu0 0.0
    %597 = vmatmul.mubr.f32.gmra.mxu0 %v242
    %v598 = vpop.f32.mrf.mxu0
    %v599 = vadd.f32 0.0, %v598
    %v600 = vpop.f32.mrf.mxu0
    %601 = vmatprep.mubr.f32.mxu0 0.0
    %602 = vmatmul.mubr.f32.gmra.mxu0 %v243
    %v603 = vpop.f32.mrf.mxu0
    %v604 = vadd.f32 0.0, %v603
    %v605 = vpop.f32.mrf.mxu0
    %606 = vdwg.mxu0
    %v607 = vmul.f32 %v368, %v529
    %v608 = vmul.f32 %v373, %v534
    %v609 = vmul.f32 %v378, %v539
    %v610 = vmul.f32 %v383, %v544
    %v611 = vmul.f32 %v388, %v549
    %v612 = vmul.f32 %v393, %v554
    %v613 = vmul.f32 %v398, %v559
    %v614 = vmul.f32 %v403, %v564
    %v615 = vmul.f32 %v408, %v569
    %v616 = vmul.f32 %v413, %v574
    %v617 = vmul.f32 %v418, %v579
    %v618 = vmul.f32 %v423, %v584
    %v619 = vmul.f32 %v428, %v589
    %v620 = vmul.f32 %v433, %v594
    %v621 = vmul.f32 %v438, %v599
    %v622 = vmul.f32 %v443, %v604
    %623 = vadd.xlane.f32.xlu0 %v607
    %v624 = vpop.xlane.xlu0 %623
    %625 = vadd.xlane.f32.xlu0 %v608
    %v626 = vpop.xlane.xlu0 %625
    %627 = vadd.xlane.f32.xlu0 %v609
    %v628 = vpop.xlane.xlu0 %627
    %629 = vadd.xlane.f32.xlu0 %v610
    %v630 = vpop.xlane.xlu0 %629
    %631 = vadd.xlane.f32.xlu0 %v611
    %v632 = vpop.xlane.xlu0 %631
    %633 = vadd.xlane.f32.xlu0 %v612
    %v634 = vpop.xlane.xlu0 %633
    %635 = vadd.xlane.f32.xlu0 %v613
    %v636 = vpop.xlane.xlu0 %635
    %637 = vadd.xlane.f32.xlu0 %v614
    %v638 = vpop.xlane.xlu0 %637
    %639 = vadd.xlane.f32.xlu0 %v615
    %v640 = vpop.xlane.xlu0 %639
    %641 = vadd.xlane.f32.xlu0 %v616
    %v642 = vpop.xlane.xlu0 %641
    %643 = vadd.xlane.f32.xlu0 %v617
    %v644 = vpop.xlane.xlu0 %643
    %645 = vadd.xlane.f32.xlu0 %v618
    %v646 = vpop.xlane.xlu0 %645
    %647 = vadd.xlane.f32.xlu0 %v619
    %v648 = vpop.xlane.xlu0 %647
    %649 = vadd.xlane.f32.xlu0 %v620
    %v650 = vpop.xlane.xlu0 %649
    %651 = vadd.xlane.f32.xlu0 %v621
    %v652 = vpop.xlane.xlu0 %651
    %653 = vadd.xlane.f32.xlu0 %v622
    %v654 = vpop.xlane.xlu0 %653
    %v671 = vlaneseq
    %v672 = vshrl.u32 %v671, 7
    %v673 = vsub.s32 %v35, %v672
    %v674 = vrot.slane %v624, %v673
    %v675 = vadd.s32 %v35, 4294967288
    %v676 = vlaneseq
    %v677 = vshrl.u32 %v676, 7
    %v678 = vsub.s32 %v675, %v677
    %v679 = vrot.slane %v626, %v678
    %vm680 = vcmask 130112
    %v681 = vsel %vm680, %v679, %v674
    %v682 = vadd.s32 %v35, 4294967280
    %v683 = vlaneseq
    %v684 = vshrl.u32 %v683, 7
    %v685 = vsub.s32 %v682, %v684
    %v686 = vrot.slane %v628, %v685
    %vm687 = vcmask 195712
    %v688 = vsel %vm687, %v686, %v681
    %v689 = vadd.s32 %v35, 4294967272
    %v690 = vlaneseq
    %v691 = vshrl.u32 %v690, 7
    %v692 = vsub.s32 %v689, %v691
    %v693 = vrot.slane %v630, %v692
    %vm694 = vcmask 261312
    %v695 = vsel %vm694, %v693, %v688
    %v696 = vadd.s32 %v35, 4294967264
    %v697 = vlaneseq
    %v698 = vshrl.u32 %v697, 7
    %v699 = vsub.s32 %v696, %v698
    %v700 = vrot.slane %v632, %v699
    %vm701 = vcmask 326912
    %v702 = vsel %vm701, %v700, %v695
    %v703 = vadd.s32 %v35, 4294967256
    %v704 = vlaneseq
    %v705 = vshrl.u32 %v704, 7
    %v706 = vsub.s32 %v703, %v705
    %v707 = vrot.slane %v634, %v706
    %vm708 = vcmask 392512
    %v709 = vsel %vm708, %v707, %v702
    %v710 = vadd.s32 %v35, 4294967248
    %v711 = vlaneseq
    %v712 = vshrl.u32 %v711, 7
    %v713 = vsub.s32 %v710, %v712
    %v714 = vrot.slane %v636, %v713
    %vm715 = vcmask 458112
    %v716 = vsel %vm715, %v714, %v709
    %v717 = vadd.s32 %v35, 4294967240
    %v718 = vlaneseq
    %v719 = vshrl.u32 %v718, 7
    %v720 = vsub.s32 %v717, %v719
    %v721 = vrot.slane %v638, %v720
    %vm722 = vcmask 523712
    %v723 = vsel %vm722, %v721, %v716
    %v724 = vadd.s32 %v35, 4294967232
    %v725 = vlaneseq
    %v726 = vshrl.u32 %v725, 7
    %v727 = vsub.s32 %v724, %v726
    %v728 = vrot.slane %v640, %v727
    %vm729 = vcmask 589312
    %v730 = vsel %vm729, %v728, %v723
    %v731 = vadd.s32 %v35, 4294967224
    %v732 = vlaneseq
    %v733 = vshrl.u32 %v732, 7
    %v734 = vsub.s32 %v731, %v733
    %v735 = vrot.slane %v642, %v734
    %vm736 = vcmask 654912
    %v737 = vsel %vm736, %v735, %v730
    %v738 = vadd.s32 %v35, 4294967216
    %v739 = vlaneseq
    %v740 = vshrl.u32 %v739, 7
    %v741 = vsub.s32 %v738, %v740
    %v742 = vrot.slane %v644, %v741
    %vm743 = vcmask 720512
    %v744 = vsel %vm743, %v742, %v737
    %v745 = vadd.s32 %v35, 4294967208
    %v746 = vlaneseq
    %v747 = vshrl.u32 %v746, 7
    %v748 = vsub.s32 %v745, %v747
    %v749 = vrot.slane %v646, %v748
    %vm750 = vcmask 786112
    %v751 = vsel %vm750, %v749, %v744
    %v752 = vadd.s32 %v35, 4294967200
    %v753 = vlaneseq
    %v754 = vshrl.u32 %v753, 7
    %v755 = vsub.s32 %v752, %v754
    %v756 = vrot.slane %v648, %v755
    %vm757 = vcmask 851712
    %v758 = vsel %vm757, %v756, %v751
    %v759 = vadd.s32 %v35, 4294967192
    %v760 = vlaneseq
    %v761 = vshrl.u32 %v760, 7
    %v762 = vsub.s32 %v759, %v761
    %v763 = vrot.slane %v650, %v762
    %vm764 = vcmask 917312
    %v765 = vsel %vm764, %v763, %v758
    %v766 = vadd.s32 %v35, 4294967184
    %v767 = vlaneseq
    %v768 = vshrl.u32 %v767, 7
    %v769 = vsub.s32 %v766, %v768
    %v770 = vrot.slane %v652, %v769
    %vm771 = vcmask 982912
    %v772 = vsel %vm771, %v770, %v765
    %v773 = vadd.s32 %v35, 4294967176
    %v774 = vlaneseq
    %v775 = vshrl.u32 %v774, 7
    %v776 = vsub.s32 %v773, %v775
    %v777 = vrot.slane %v654, %v776
    %vm778 = vcmask 1048512
    %v779 = vsel %vm778, %v777, %v772
    %781 = vst [vmem:[#allocation2] sm:$0x1] %v779
    // Predicated region
    $region18: #{tpu_custom_call.1} parent=1 // pred_check
      _
    $region19: #{tpu_custom_call.1} parent=1 // pred_check_branch
      %783 = sbr.rel (0) target = $region21
    $region20: #{tpu_custom_call.1} parent=1 // pred_region
      %s785 = ssub.s32 16, 16
      %786 = vsyncadd [#allocation3], %s785
      %s788 = sshll.u32 [#allocation2], 4
      %s789 = int_to_ptr.vmem [resolvable:$true] %s788
      %791 = dma.vmem_to_hbm [thread:$0]  %s789, 16, %s4, [#allocation3]
    $region21: #{tpu_custom_call.1} parent=1 // pred_fallthru
      _
    // Predicated region
    $region22: #{tpu_custom_call.1} parent=1 // pred_check
      _
    $region23: #{tpu_custom_call.1} parent=1 // pred_check_branch
      %793 = sbr.rel (0) target = $region25
    $region24: #{tpu_custom_call.1} parent=1 // pred_region
      %794 = dma.done [#allocation3], 16
    $region25: #{tpu_custom_call.1} parent=1 // pred_fallthru
      _
    %795 = vsyncpa [#allocation3], 1

</llo_original>
